<compile_context>
chip_gen: v6e
topology: v6e:2x2x1
jax: 0.10.0
libtpu: 0.0.40
codegen_flags: <defaults>
</compile_context>

<pallas_src>
import functools

import jax
import jax.numpy as jnp
import numpy as np
from jax.experimental import pallas as pl
from jax.experimental.pallas import tpu as pltpu

L, K = 12, 3            # sequence length, conv kernel size
C1, C2 = 16, 32         # conv channels
H, OUT = 128, 12        # fc sizes
F1 = L * C1             # 192 : conv1 output features (layout l*C1 + ci)
F2 = C2 * L             # 384 : conv2 output features (PyTorch channel-major c*L + l)
OUT_PAD = 128           # lane-dense padded output width
BT_MAX = 256            # max batch tile (multiple of 8; 256 feeds the MXU well)

# Static band mask M1[k, li, l] = 1 iff li == l + k - 1 and 0 <= li < L
_M1_np = np.zeros((K, L, L), np.float32)
for _l in range(L):
    for _k in range(K):
        _li = _l + _k - 1
        if 0 <= _li < L:
            _M1_np[_k, _li, _l] = 1.0
_M1 = jnp.asarray(_M1_np)


def fishcnn_kernel(x_ref, a1_ref, b1_ref, a2_ref, b2_ref,
                   wfc1_ref, bfc1_ref, wfc2_ref, bfc2_ref, out_ref):
    # x_ref: (Bt, 12) -- Bt batch rows on sublanes.
    x = x_ref[...]

    # conv1 (+bias, ReLU) as one matmul: (Bt,12) @ (12,192)
    h1 = jnp.dot(x, a1_ref[...], preferred_element_type=jnp.float32) + b1_ref[...]
    h1 = jnp.maximum(h1, 0.0)                                          # (Bt, 192)

    # conv2 (+bias, ReLU) as one matmul: (Bt,192) @ (192,384)
    h2 = jnp.dot(h1, a2_ref[...], preferred_element_type=jnp.float32) + b2_ref[...]
    h2 = jnp.maximum(h2, 0.0)                                          # (Bt, 384)

    # fc1 (+ReLU): (Bt,384) @ (384,128)
    z = jnp.dot(h2, wfc1_ref[...], preferred_element_type=jnp.float32) + bfc1_ref[...]
    z = jnp.maximum(z, 0.0)                                            # (Bt, 128)
    # TODO(synk): nn.Dropout(0.2) is identity at inference; training-mode masking not implemented.

    # fc2 (padded to 128 output lanes, unmasked lane-dense store): (Bt,128) @ (128,128)
    out_ref[...] = (jnp.dot(z, wfc2_ref[...], preferred_element_type=jnp.float32)
                    + bfc2_ref[...])                                   # (Bt, 128)


def _build_conv_matrices(params):
    """Fold the two Conv1d layers into dense banded matrices (plain-JAX glue)."""
    w1 = params["conv1_w"].astype(jnp.float32)          # (C1, 1, K)
    w2 = params["conv2_w"].astype(jnp.float32)          # (C2, C1, K)

    # A1[li, l*C1 + co] = w1[co, 0, k] with li = l + k - 1 (zero outside [0,L))
    A1 = jnp.einsum("kil,ck->ilc", _M1, w1[:, 0, :]).reshape(L, F1)            # (12, 192)
    b1f = jnp.tile(params["conv1_b"].astype(jnp.float32), L)[None, :]          # (1, 192)

    # A2[li*C1 + ci, co*L + l] = w2[co, ci, k] with li = l + k - 1
    A2 = jnp.einsum("kil,ock->icol", _M1, w2).reshape(F1, F2)                  # (192, 384)
    b2f = jnp.repeat(params["conv2_b"].astype(jnp.float32), L)[None, :]        # (1, 384)

    return A1, b1f, A2, b2f


@functools.partial(jax.jit, static_argnames=("block_b",))
def fishcnn_forward(x, params, block_b=BT_MAX):
    """x: (B, 1, 12) float32 (PyTorch NCW).  Returns (B, 12)."""
    B = x.shape[0]
    # Adaptive batch tile: multiple of 8, capped at block_b.
    Bt = min(block_b, max(8, ((B + 7) // 8) * 8))
    B_pad = ((B + Bt - 1) // Bt) * Bt

    # ---- glue: reorganize PyTorch-convention weights for the batched matmul kernel ----
    A1, b1f, A2, b2f = _build_conv_matrices(params)
    wfc1 = params["fc1_w"].astype(jnp.float32).T                                # (384, 128)
    bfc1 = params["fc1_b"].astype(jnp.float32)[None, :]                         # (1, 128)
    wfc2 = jnp.zeros((H, OUT_PAD), jnp.float32).at[:, :OUT].set(
        params["fc2_w"].astype(jnp.float32).T)                                  # (128, 128)
    bfc2 = jnp.zeros((1, OUT_PAD), jnp.float32).at[0, :OUT].set(
        params["fc2_b"].astype(jnp.float32))                                    # (1, 128)

    x2 = x.reshape(B, L).astype(jnp.float32)                                    # (B, 12)
    if B_pad != B:
        x2 = jnp.pad(x2, ((0, B_pad - B), (0, 0)))

    out = pl.pallas_call(
        fishcnn_kernel,
        out_shape=jax.ShapeDtypeStruct((B_pad, OUT_PAD), jnp.float32),
        grid_spec=pltpu.PrefetchScalarGridSpec(
            num_scalar_prefetch=0,
            grid=(B_pad // Bt,),
            in_specs=[
                pl.BlockSpec((Bt, L), lambda b: (b, 0)),        # x        (batch-tiled)
                pl.BlockSpec((L, F1), lambda b: (0, 0)),        # conv1 matrix (resident)
                pl.BlockSpec((1, F1), lambda b: (0, 0)),        # conv1 bias
                pl.BlockSpec((F1, F2), lambda b: (0, 0)),       # conv2 matrix (resident)
                pl.BlockSpec((1, F2), lambda b: (0, 0)),        # conv2 bias
                pl.BlockSpec((F2, H), lambda b: (0, 0)),        # fc1 weight
                pl.BlockSpec((1, H), lambda b: (0, 0)),         # fc1 bias
                pl.BlockSpec((H, OUT_PAD), lambda b: (0, 0)),   # fc2 weight (lane-padded)
                pl.BlockSpec((1, OUT_PAD), lambda b: (0, 0)),   # fc2 bias   (lane-padded)
            ],
            out_specs=pl.BlockSpec((Bt, OUT_PAD), lambda b: (b, 0)),
        ),
        compiler_params=pltpu.CompilerParams(
            dimension_semantics=("parallel",)),
    )(x2, A1, b1f, A2, b2f, wfc1, bfc1, wfc2, bfc2)

    return out[:B, :OUT]


# ---------------- pure-JAX reference (matches PyTorch semantics) ----------------
def ref_forward(x, params):
    def conv1d(h, w, b):
        Lx = h.shape[-1]
        hp = jnp.pad(h, ((0, 0), (0, 0), (1, 1)))
        cols = jnp.stack([hp[:, :, k:k + Lx] for k in range(K)], axis=-1)  # (B,Cin,L,K)
        return jnp.einsum("bclk,ock->bol", cols, w) + b[None, :, None]

    h = jax.nn.relu(conv1d(x, params["conv1_w"], params["conv1_b"]))
    h = jax.nn.relu(conv1d(h, params["conv2_w"], params["conv2_b"]))
    h = h.reshape(h.shape[0], -1)                      # channel-major flatten, like .view
    h = jax.nn.relu(h @ params["fc1_w"].T + params["fc1_b"])
    return h @ params["fc2_w"].T + params["fc2_b"]


if __name__ == "__main__":
    key = jax.random.PRNGKey(0)
    ks = jax.random.split(key, 10)

    # deterministic synthetic parameters, PyTorch-convention shapes
    params = {
        "conv1_w": 0.3 * jax.random.normal(ks[0], (C1, 1, K), jnp.float32),
        "conv1_b": 0.1 * jax.random.normal(ks[1], (C1,), jnp.float32),
        "conv2_w": 0.1 * jax.random.normal(ks[2], (C2, C1, K), jnp.float32),
        "conv2_b": 0.1 * jax.random.normal(ks[3], (C2,), jnp.float32),
        "fc1_w": 0.05 * jax.random.normal(ks[4], (H, C2 * L), jnp.float32),
        "fc1_b": 0.1 * jax.random.normal(ks[5], (H,), jnp.float32),
        "fc2_w": 0.05 * jax.random.normal(ks[6], (OUT, H), jnp.float32),
        "fc2_b": 0.1 * jax.random.normal(ks[7], (OUT,), jnp.float32),
    }

    B = 2
    x = jax.random.normal(ks[8], (B, 1, L), jnp.float32)   # PyTorch NCW input

    y = fishcnn_forward(x, params)
    y = jax.block_until_ready(y)

    y_ref = ref_forward(x, params)
    assert y.shape == (B, OUT)
    assert jnp.allclose(y, y_ref, atol=2e-4, rtol=2e-4), (y, y_ref)
    print("KERNEL_OK")
</pallas_src>

<mosaic_0001>
module attributes {stable_mosaic.version = 11 : i64} {
  func.func @fishcnn_kernel(%arg0: i32, %arg1: memref<8x12xf32, #tpu.memory_space<vmem>>, %arg2: memref<12x192xf32, #tpu.memory_space<vmem>>, %arg3: memref<1x192xf32, #tpu.memory_space<vmem>>, %arg4: memref<192x384xf32, #tpu.memory_space<vmem>>, %arg5: memref<1x384xf32, #tpu.memory_space<vmem>>, %arg6: memref<384x128xf32, #tpu.memory_space<vmem>>, %arg7: memref<1x128xf32, #tpu.memory_space<vmem>>, %arg8: memref<128x128xf32, #tpu.memory_space<vmem>>, %arg9: memref<1x128xf32, #tpu.memory_space<vmem>>, %arg10: memref<8x128xf32, #tpu.memory_space<vmem>>) attributes {dimension_semantics = [#tpu.dimension_semantics<parallel>], iteration_bounds = array<i64: 1>, scalar_prefetch = 0 : i64, scratch_operands = 0 : i64, tpu.core_type = #tpu.core_type<tc>, window_params = [{transform_indices = @transform_0, window_bounds = array<i64: 8, 12>}, {pipeline_mode = #tpu.pipeline_mode<synchronous>, transform_indices = @transform_1, window_bounds = array<i64: 12, 192>}, {pipeline_mode = #tpu.pipeline_mode<synchronous>, transform_indices = @transform_2, window_bounds = array<i64: 1, 192>}, {pipeline_mode = #tpu.pipeline_mode<synchronous>, transform_indices = @transform_3, window_bounds = array<i64: 192, 384>}, {pipeline_mode = #tpu.pipeline_mode<synchronous>, transform_indices = @transform_4, window_bounds = array<i64: 1, 384>}, {pipeline_mode = #tpu.pipeline_mode<synchronous>, transform_indices = @transform_5, window_bounds = array<i64: 384, 128>}, {pipeline_mode = #tpu.pipeline_mode<synchronous>, transform_indices = @transform_6, window_bounds = array<i64: 1, 128>}, {pipeline_mode = #tpu.pipeline_mode<synchronous>, transform_indices = @transform_7, window_bounds = array<i64: 128, 128>}, {pipeline_mode = #tpu.pipeline_mode<synchronous>, transform_indices = @transform_8, window_bounds = array<i64: 1, 128>}, {transform_indices = @transform_9, window_bounds = array<i64: 8, 128>}]} {
    %c0 = arith.constant 0 : index
    %c0_0 = arith.constant 0 : index
    %0 = vector.load %arg1[%c0, %c0_0] : memref<8x12xf32, #tpu.memory_space<vmem>>, vector<8x12xf32>
    %c0_1 = arith.constant 0 : index
    %c0_2 = arith.constant 0 : index
    %1 = vector.load %arg2[%c0_1, %c0_2] : memref<12x192xf32, #tpu.memory_space<vmem>>, vector<12x192xf32>
    %cst = arith.constant dense<0.000000e+00> : vector<8x192xf32>
    %2 = tpu.matmul %0, %1, %cst {dimension_numbers = #tpu.dot_dimension_numbers<[1], [0], [0], [1], [0, 0, 1, 1], [], []>} : vector<8x12xf32>, vector<12x192xf32>, vector<8x192xf32> -> vector<8x192xf32>
    %c0_3 = arith.constant 0 : index
    %c0_4 = arith.constant 0 : index
    %3 = vector.load %arg3[%c0_3, %c0_4] : memref<1x192xf32, #tpu.memory_space<vmem>>, vector<1x192xf32>
    %4 = vector.broadcast %3 : vector<1x192xf32> to vector<8x192xf32>
    %5 = arith.addf %2, %4 : vector<8x192xf32>
    %cst_5 = arith.constant 0.000000e+00 : f32
    %6 = vector.broadcast %cst_5 : f32 to vector<8x192xf32>
    %7 = arith.maximumf %5, %6 : vector<8x192xf32>
    %c0_6 = arith.constant 0 : index
    %c0_7 = arith.constant 0 : index
    %8 = vector.load %arg4[%c0_6, %c0_7] : memref<192x384xf32, #tpu.memory_space<vmem>>, vector<192x384xf32>
    %cst_8 = arith.constant dense<0.000000e+00> : vector<8x384xf32>
    %9 = tpu.matmul %7, %8, %cst_8 {dimension_numbers = #tpu.dot_dimension_numbers<[1], [0], [0], [1], [0, 0, 1, 1], [], []>} : vector<8x192xf32>, vector<192x384xf32>, vector<8x384xf32> -> vector<8x384xf32>
    %c0_9 = arith.constant 0 : index
    %c0_10 = arith.constant 0 : index
    %10 = vector.load %arg5[%c0_9, %c0_10] : memref<1x384xf32, #tpu.memory_space<vmem>>, vector<1x384xf32>
    %11 = vector.broadcast %10 : vector<1x384xf32> to vector<8x384xf32>
    %12 = arith.addf %9, %11 : vector<8x384xf32>
    %cst_11 = arith.constant 0.000000e+00 : f32
    %13 = vector.broadcast %cst_11 : f32 to vector<8x384xf32>
    %14 = arith.maximumf %12, %13 : vector<8x384xf32>
    %c0_12 = arith.constant 0 : index
    %c0_13 = arith.constant 0 : index
    %15 = vector.load %arg6[%c0_12, %c0_13] : memref<384x128xf32, #tpu.memory_space<vmem>>, vector<384x128xf32>
    %cst_14 = arith.constant dense<0.000000e+00> : vector<8x128xf32>
    %16 = tpu.matmul %14, %15, %cst_14 {dimension_numbers = #tpu.dot_dimension_numbers<[1], [0], [0], [1], [0, 0, 1, 1], [], []>} : vector<8x384xf32>, vector<384x128xf32>, vector<8x128xf32> -> vector<8x128xf32>
    %c0_15 = arith.constant 0 : index
    %c0_16 = arith.constant 0 : index
    %17 = vector.load %arg7[%c0_15, %c0_16] : memref<1x128xf32, #tpu.memory_space<vmem>>, vector<1x128xf32>
    %18 = vector.broadcast %17 : vector<1x128xf32> to vector<8x128xf32>
    %19 = arith.addf %16, %18 : vector<8x128xf32>
    %cst_17 = arith.constant 0.000000e+00 : f32
    %20 = vector.broadcast %cst_17 : f32 to vector<8x128xf32>
    %21 = arith.maximumf %19, %20 : vector<8x128xf32>
    %c0_18 = arith.constant 0 : index
    %c0_19 = arith.constant 0 : index
    %22 = vector.load %arg8[%c0_18, %c0_19] : memref<128x128xf32, #tpu.memory_space<vmem>>, vector<128x128xf32>
    %cst_20 = arith.constant dense<0.000000e+00> : vector<8x128xf32>
    %23 = tpu.matmul %21, %22, %cst_20 {dimension_numbers = #tpu.dot_dimension_numbers<[1], [0], [0], [1], [0, 0, 1, 1], [], []>} : vector<8x128xf32>, vector<128x128xf32>, vector<8x128xf32> -> vector<8x128xf32>
    %c0_21 = arith.constant 0 : index
    %c0_22 = arith.constant 0 : index
    %24 = vector.load %arg9[%c0_21, %c0_22] : memref<1x128xf32, #tpu.memory_space<vmem>>, vector<1x128xf32>
    %25 = vector.broadcast %24 : vector<1x128xf32> to vector<8x128xf32>
    %26 = arith.addf %23, %25 : vector<8x128xf32>
    %c0_23 = arith.constant 0 : index
    %c0_24 = arith.constant 0 : index
    %27 = vector.load %arg10[%c0_23, %c0_24] : memref<8x128xf32, #tpu.memory_space<vmem>>, vector<8x128xf32>
    tpu.vector_store %arg10[%c0_23, %c0_24], %26 {strides = array<i32>} : memref<8x128xf32, #tpu.memory_space<vmem>>, vector<8x128xf32>,
    return
  }
  func.func @transform_0(%arg0: i32) -> (i32, i32) {
    %c0_i32 = arith.constant 0 : i32
    %c0_i32_0 = arith.constant 0 : i32
    return %arg0, %c0_i32 : i32, i32
  }
  func.func @transform_1(%arg0: i32) -> (i32, i32) {
    %c0_i32 = arith.constant 0 : i32
    %c0_i32_0 = arith.constant 0 : i32
    %c0_i32_1 = arith.constant 0 : i32
    return %c0_i32, %c0_i32_0 : i32, i32
  }
  func.func @transform_2(%arg0: i32) -> (i32, i32) {
    %c0_i32 = arith.constant 0 : i32
    %c0_i32_0 = arith.constant 0 : i32
    %c0_i32_1 = arith.constant 0 : i32
    return %c0_i32, %c0_i32_0 : i32, i32
  }
  func.func @transform_3(%arg0: i32) -> (i32, i32) {
    %c0_i32 = arith.constant 0 : i32
    %c0_i32_0 = arith.constant 0 : i32
    %c0_i32_1 = arith.constant 0 : i32
    return %c0_i32, %c0_i32_0 : i32, i32
  }
  func.func @transform_4(%arg0: i32) -> (i32, i32) {
    %c0_i32 = arith.constant 0 : i32
    %c0_i32_0 = arith.constant 0 : i32
    %c0_i32_1 = arith.constant 0 : i32
    return %c0_i32, %c0_i32_0 : i32, i32
  }
  func.func @transform_5(%arg0: i32) -> (i32, i32) {
    %c0_i32 = arith.constant 0 : i32
    %c0_i32_0 = arith.constant 0 : i32
    %c0_i32_1 = arith.constant 0 : i32
    return %c0_i32, %c0_i32_0 : i32, i32
  }
  func.func @transform_6(%arg0: i32) -> (i32, i32) {
    %c0_i32 = arith.constant 0 : i32
    %c0_i32_0 = arith.constant 0 : i32
    %c0_i32_1 = arith.constant 0 : i32
    return %c0_i32, %c0_i32_0 : i32, i32
  }
  func.func @transform_7(%arg0: i32) -> (i32, i32) {
    %c0_i32 = arith.constant 0 : i32
    %c0_i32_0 = arith.constant 0 : i32
    %c0_i32_1 = arith.constant 0 : i32
    return %c0_i32, %c0_i32_0 : i32, i32
  }
  func.func @transform_8(%arg0: i32) -> (i32, i32) {
    %c0_i32 = arith.constant 0 : i32
    %c0_i32_0 = arith.constant 0 : i32
    %c0_i32_1 = arith.constant 0 : i32
    return %c0_i32, %c0_i32_0 : i32, i32
  }
  func.func @transform_9(%arg0: i32) -> (i32, i32) {
    %c0_i32 = arith.constant 0 : i32
    %c0_i32_0 = arith.constant 0 : i32
    return %arg0, %c0_i32 : i32, i32
  }
}

</mosaic_0001>

<llo_original>
// kernel: tile.8
$region0: #{tile.8}
  #allocation2 [shape = 's32[1]{0}', space=sflag, size = 0x4, scoped, tag = 'scoped memory for tile.8']
  %s0 = inlined_call_operand.hbm [shape: f32[16], index: 0, kind: input, shape index: {}]
  %s1 = inlined_call_operand.vmem [shape: f32[12,16], index: 1, kind: output, shape index: {}]
  $region1: #{tile.8} parent=0
    #allocation0 [shape = 'u8[512]{0}', space=vmem, size = 0x400, scoped, tag = 'operand span for operand 0']
    #allocation1 [shape = 's32[1]{0}', space=sflag, size = 0x4, scoped, tag = 'scoped memory for tile.8']
    %2 = vsyncpa [#allocation1], 0
    // Predicated region
    $region2: #{tile.8} parent=1 // pred_check
      _
    $region3: #{tile.8} parent=1 // pred_check_branch
      %4 = sbr.rel (0) target = $region5
    $region4: #{tile.8} parent=1 // pred_region
      %s6 = ssub.s32 16, 16
      %7 = vsyncadd [#allocation1], %s6
      %s9 = sshll.u32 [#allocation0], 4
      %s10 = int_to_ptr.vmem [resolvable:$true] %s9
      %12 = dma.hbm_to_vmem [thread:$0]  %s0, 16, %s10, [#allocation1]
    $region5: #{tile.8} parent=1 // pred_fallthru
      _
    // Predicated region
    $region6: #{tile.8} parent=1 // pred_check
      _
    $region7: #{tile.8} parent=1 // pred_check_branch
      %14 = sbr.rel (0) target = $region9
    $region8: #{tile.8} parent=1 // pred_region
      %15 = dma.done [#allocation1], 16
    $region9: #{tile.8} parent=1 // pred_fallthru
      _
    %v16 = vld [vmem:[#allocation0] ss:$0 sm:$0xff]
    %17 = vst [vmem:[%s1] sm:$0xff] %v16
    %s18 = scalar_lea.vmem %s1, 8
    %19 = vst [vmem:[%s18] sm:$0xff] %v16
    %20 = vsyncpa [#allocation1], 1

// kernel: tile.9
$region0: #{tile.9}
  %s0 = inlined_call_operand.vmem [shape: f32[12,16], index: 0, kind: input, shape index: {}]
  %s1 = inlined_call_operand.vmem [shape: f32[1,192], index: 1, kind: output, shape index: {}]
  $region1: #{tile.9} parent=0
    #allocation0 [shape = 'u8[8192]{0}', space=vmem, size = 0x2000, scoped, tag = 'scoped mem for output reshape']
    %s2 = smov 3
    %v3 = vld [vmem:[%s0] ss:$8 sm:%s2]
    %vm4 = vcmask 130048
    %5 = vst.msk [vmem:[#allocation0] ss:$8 sm:$0x3] %vm4, %v3
    %s6 = scalar_lea.vmem %s0, 7
    %v7 = vld [vmem:[%s6] sm:$0x1]
    %8 = vrot.lane.b32.xlu0 %v7, 112
    %v9 = vpop.permute.xlu0 %8
    %vm10 = vcmask 1048448
    %11 = vst.msk [vmem:[#allocation0] sm:$0x1] %vm10, %v9
    %s12 = scalar_lea.vmem %s0, 6
    %v13 = vld [vmem:[%s12] sm:$0x1]
    %14 = vrot.lane.b32.xlu0 %v13, 96
    %v15 = vpop.permute.xlu0 %14
    %vm16 = vcmask 917248
    %17 = vst.msk [vmem:[#allocation0] sm:$0x1] %vm16, %v15
    %s18 = scalar_lea.vmem %s0, 5
    %v19 = vld [vmem:[%s18] sm:$0x1]
    %20 = vrot.lane.b32.xlu0 %v19, 80
    %v21 = vpop.permute.xlu0 %20
    %vm22 = vcmask 786048
    %23 = vst.msk [vmem:[#allocation0] sm:$0x1] %vm22, %v21
    %s24 = scalar_lea.vmem %s0, 4
    %v25 = vld [vmem:[%s24] sm:$0x1]
    %26 = vrot.lane.b32.xlu0 %v25, 64
    %v27 = vpop.permute.xlu0 %26
    %vm28 = vcmask 654848
    %29 = vst.msk [vmem:[#allocation0] sm:$0x1] %vm28, %v27
    %s30 = scalar_lea.vmem %s0, 3
    %s31 = smov 3
    %v32 = vld [vmem:[%s30] ss:$8 sm:%s31]
    %33 = vrot.lane.b32.xlu0 %v32, 48
    %v34 = vpop.permute.xlu0 %33
    %vm35 = vcmask 523648
    %36 = vst.msk [vmem:[#allocation0] ss:$8 sm:$0x3] %vm35, %v34
    %s37 = scalar_lea.vmem %s0, 2
    %s38 = smov 3
    %v39 = vld [vmem:[%s37] ss:$8 sm:%s38]
    %40 = vrot.lane.b32.xlu0 %v39, 32
    %v41 = vpop.permute.xlu0 %40
    %vm42 = vcmask 392448
    %43 = vst.msk [vmem:[#allocation0] ss:$8 sm:$0x3] %vm42, %v41
    %s44 = scalar_lea.vmem %s0, 1
    %s45 = smov 3
    %v46 = vld [vmem:[%s44] ss:$8 sm:%s45]
    %47 = vrot.lane.b32.xlu0 %v46, 16
    %v48 = vpop.permute.xlu0 %47
    %vm49 = vcmask 261248
    %50 = vst.msk [vmem:[#allocation0] ss:$8 sm:$0x3] %vm49, %v48
    %s52 = sshll.u32 1, 1
    %s53 = ssub.s32 %s52, 1
    %v55 = vld [vmem:[#allocation0] sm:%s53]
    %s56 = sshll.u32 1, 1
    %s57 = ssub.s32 %s56, 1
    %58 = vst [vmem:[%s1] sm:%s57] %v55
    %s59 = scalar_lea.vmem [#allocation0], 8
    %v60 = vld [vmem:[%s59] sm:%s53]
    %s61 = sshll.u32 1, 1
    %s62 = ssub.s32 %s61, 1
    %s63 = scalar_lea.vmem %s1, 1
    %64 = vst [vmem:[%s63] sm:%s62] %v60

// kernel: fishcnn_forward.1
$region0: #{fishcnn_forward.1}
  #allocation0 [shape = 'u32[]', space=smem, size = 0x4, offset = 0x4, fixed_abs, tag = 'smem constant byte address 0x4 - core index']
  #allocation1 [shape = 'u32[144,128]{1,0:T(1,128)}', space=vmem, size = 0x12000, scoped, tag = 'internal scratch']
  %s0 = inlined_call_operand.vmem [shape: f32[8,12], index: 0, kind: input, shape index: {}]
  %s1 = inlined_call_operand.vmem [shape: f32[12,192], index: 1, kind: input, shape index: {}]
  %s2 = inlined_call_operand.vmem [shape: f32[1,192], index: 2, kind: input, shape index: {}]
  %s3 = inlined_call_operand.vmem [shape: f32[192,384], index: 3, kind: input, shape index: {}]
  %s4 = inlined_call_operand.vmem [shape: f32[1,384], index: 4, kind: input, shape index: {}]
  %s5 = inlined_call_operand.vmem [shape: f32[384,128], index: 5, kind: input, shape index: {}]
  %s6 = inlined_call_operand.vmem [shape: f32[1,128], index: 6, kind: input, shape index: {}]
  %s7 = inlined_call_operand.vmem [shape: f32[128,128], index: 7, kind: input, shape index: {}]
  %s8 = inlined_call_operand.vmem [shape: f32[1,128], index: 8, kind: input, shape index: {}]
  %s9 = inlined_call_operand.vmem [shape: f32[8,128], index: 9, kind: output, shape index: {}]
  %s10 = sld [smem:[#allocation0]]
  $region46: #{fishcnn_forward.1} parent=0
    _
  %s12 = ssub.s32 1, %s10
  %s13 = scalar_select 0, %s12, %s10
  // Predicated region
  $region2: #{fishcnn_forward.1} parent=0 // pred_check
    _
  $region3: #{fishcnn_forward.1} parent=0 // pred_check_branch
    %15 = sbr.rel (0) target = $region5
  $region4: #{fishcnn_forward.1} parent=0 // pred_region
    _
  $region5: #{fishcnn_forward.1} parent=0 // pred_fallthru
    _
  // Predicated region
  $region6: #{fishcnn_forward.1} parent=0 // pred_check
    _
  $region7: #{fishcnn_forward.1} parent=0 // pred_check_branch
    %17 = sbr.rel (0) target = $region9
  $region8: #{fishcnn_forward.1} parent=0 // pred_region
    _
  $region9: #{fishcnn_forward.1} parent=0 // pred_fallthru
    _
  // Predicated region
  $region10: #{fishcnn_forward.1} parent=0 // pred_check
    _
  $region11: #{fishcnn_forward.1} parent=0 // pred_check_branch
    %19 = sbr.rel (0) target = $region13
  $region12: #{fishcnn_forward.1} parent=0 // pred_region
    _
  $region13: #{fishcnn_forward.1} parent=0 // pred_fallthru
    _
  // Predicated region
  $region14: #{fishcnn_forward.1} parent=0 // pred_check
    _
  $region15: #{fishcnn_forward.1} parent=0 // pred_check_branch
    %21 = sbr.rel (0) target = $region17
  $region16: #{fishcnn_forward.1} parent=0 // pred_region
    _
  $region17: #{fishcnn_forward.1} parent=0 // pred_fallthru
    _
  // Predicated region
  $region18: #{fishcnn_forward.1} parent=0 // pred_check
    _
  $region19: #{fishcnn_forward.1} parent=0 // pred_check_branch
    %23 = sbr.rel (0) target = $region21
  $region20: #{fishcnn_forward.1} parent=0 // pred_region
    _
  $region21: #{fishcnn_forward.1} parent=0 // pred_fallthru
    _
  // Predicated region
  $region22: #{fishcnn_forward.1} parent=0 // pred_check
    _
  $region23: #{fishcnn_forward.1} parent=0 // pred_check_branch
    %25 = sbr.rel (0) target = $region25
  $region24: #{fishcnn_forward.1} parent=0 // pred_region
    _
  $region25: #{fishcnn_forward.1} parent=0 // pred_fallthru
    _
  // Predicated region
  $region26: #{fishcnn_forward.1} parent=0 // pred_check
    _
  $region27: #{fishcnn_forward.1} parent=0 // pred_check_branch
    %27 = sbr.rel (0) target = $region29
  $region28: #{fishcnn_forward.1} parent=0 // pred_region
    _
  $region29: #{fishcnn_forward.1} parent=0 // pred_fallthru
    _
  // Predicated region
  $region30: #{fishcnn_forward.1} parent=0 // pred_check
    _
  $region31: #{fishcnn_forward.1} parent=0 // pred_check_branch
    %29 = sbr.rel (0) target = $region33
  $region32: #{fishcnn_forward.1} parent=0 // pred_region
    _
  $region33: #{fishcnn_forward.1} parent=0 // pred_fallthru
    _
  // Predicated region
  $region34: #{fishcnn_forward.1} parent=0 // pred_check
    _
  $region35: #{fishcnn_forward.1} parent=0 // pred_check_branch
    %31 = sbr.rel (0) target = $region37
  $region36: #{fishcnn_forward.1} parent=0 // pred_region
    _
  $region37: #{fishcnn_forward.1} parent=0 // pred_fallthru
    _
  %v32 = vld [vmem:[%s0] sm:$0xff]
  %v33 = vld [vmem:[%s1] sm:$0xff]
  %v34 = vld [vmem:[%s1 + $0x8] sm:$0xff]
  %v35 = vld [vmem:[%s1 + $0x10] sm:$0xf]
  %v36 = vld [vmem:[%s1 + $0x18] sm:$0xf]
  %v37 = vld [vmem:[%s2] sm:$0x3]
  %v39 = vlaneseq
  %v40 = vshrl.u32 %v39, 7
  %v41 = vsub.s32 0, %v40
  %v42 = vrot.slane %v37, %v41
  %v43 = vlaneseq
  %v44 = vshrl.u32 %v43, 7
  %v45 = vsub.s32 1, %v44
  %v46 = vrot.slane %v37, %v45
  %vm49 = vcmask 97280
  %v51 = vsel %vm49, %v32, 0
  %vm53 = vcmask 1043456
  %v55 = vsel %vm53, %v35, 0
  %v58 = vsel %vm53, %v36, 0
  %60 = vmatprep.subr.mxu0 0.0
  %61 = vmatpush1.msra.mxu0 0.0
  %62 = vmatprep.subr.mxu0 0.0
  %63 = vmatpush1.msra.mxu0 0.0
  %64 = vmatprep.subr.mxu0 0.0
  %65 = vmatpush1.msra.mxu0 0.0
  %66 = vmatprep.subr.mxu0 0.0
  %67 = vmatpush1.msra.mxu0 0.0
  %68 = vmatprep.subr.mxu0 0.0
  %69 = vmatpush1.msra.mxu0 0.0
  %70 = vmatprep.subr.mxu0 0.0
  %71 = vmatpush1.msra.mxu0 0.0
  %72 = vmatprep.subr.mxu0 0.0
  %73 = vmatpush1.msra.mxu0 0.0
  %74 = vmatprep.subr.mxu0 0.0
  %75 = vmatpush1.msra.mxu0 0.0
  %76 = vmatprep.subr.mxu0 0.0
  %77 = vmatpush1.msra.mxu0 0.0
  %78 = vmatprep.subr.mxu0 0.0
  %79 = vmatpush1.msra.mxu0 0.0
  %80 = vmatprep.subr.mxu0 0.0
  %81 = vmatpush1.msra.mxu0 0.0
  %82 = vmatprep.subr.mxu0 0.0
  %83 = vmatpush1.msra.mxu0 0.0
  %84 = vmatprep.subr.mxu0 0.0
  %85 = vmatpush1.msra.mxu0 0.0
  %86 = vmatprep.subr.mxu0 0.0
  %87 = vmatpush1.msra.mxu0 0.0
  %88 = vmatprep.subr.mxu0 %v58
  %89 = vmatpush1.msra.mxu0 %v55
  %90 = vmatprep.subr.mxu0 %v34
  %91 = vmatpush1.msra.mxu0 %v33
  %92 = vmatprep.subr.mxu0 0.0
  %93 = vmatpush2.msra.mxu0 0.0
  %94 = vmatprep.subr.mxu0 0.0
  %95 = vmatpush2.msra.mxu0 0.0
  %96 = vmatprep.subr.mxu0 0.0
  %97 = vmatpush2.msra.mxu0 0.0
  %98 = vmatprep.subr.mxu0 0.0
  %99 = vmatpush2.msra.mxu0 0.0
  %100 = vmatprep.subr.mxu0 0.0
  %101 = vmatpush2.msra.mxu0 0.0
  %102 = vmatprep.subr.mxu0 0.0
  %103 = vmatpush2.msra.mxu0 0.0
  %104 = vmatprep.subr.mxu0 0.0
  %105 = vmatpush2.msra.mxu0 0.0
  %106 = vmatprep.subr.mxu0 0.0
  %107 = vmatpush2.msra.mxu0 0.0
  %108 = vmatprep.subr.mxu0 0.0
  %109 = vmatpush2.msra.mxu0 0.0
  %110 = vmatprep.subr.mxu0 0.0
  %111 = vmatpush2.msra.mxu0 0.0
  %112 = vmatprep.subr.mxu0 0.0
  %113 = vmatpush2.msra.mxu0 0.0
  %114 = vmatprep.subr.mxu0 0.0
  %115 = vmatpush2.msra.mxu0 0.0
  %116 = vmatprep.subr.mxu0 0.0
  %117 = vmatpush2.msra.mxu0 0.0
  %118 = vmatprep.subr.mxu0 0.0
  %119 = vmatpush2.msra.mxu0 0.0
  %120 = vmatprep.subr.mxu0 0.0
  %121 = vmatpush2.msra.mxu0 0.0
  %122 = vmatprep.subr.mxu0 0.0
  %123 = vmatpush2.msra.mxu0 0.0
  %124 = vmatprep.mubr.f32.mxu0 0.0
  %125 = vmatmul.mubr.f32.gmra.mxu0 %v51
  %v126 = vpop.f32.mrf.mxu0
  %v127 = vadd.f32 %v42, %v126
  %v128 = vpop.f32.mrf.mxu0
  %v129 = vadd.f32 %v46, %v128
  %130 = vdwg.mxu0
  %v131 = vmax.f32 %v127, 0.0
  %v132 = vmax.f32 %v129, 0.0
  %v133 = vld [vmem:[%s3] sm:$0xff]
  %v134 = vld [vmem:[%s3 + $0x8] sm:$0xff]
  %v135 = vld [vmem:[%s3 + $0x10] sm:$0xff]
  %v136 = vld [vmem:[%s3 + $0x18] sm:$0xff]
  %v137 = vld [vmem:[%s3 + $0x20] sm:$0xff]
  %v138 = vld [vmem:[%s3 + $0x28] sm:$0xff]
  %v139 = vld [vmem:[%s3 + $0x30] sm:$0xff]
  %v140 = vld [vmem:[%s3 + $0x38] sm:$0xff]
  %v141 = vld [vmem:[%s3 + $0x40] sm:$0xff]
  %v142 = vld [vmem:[%s3 + $0x48] sm:$0xff]
  %v143 = vld [vmem:[%s3 + $0x50] sm:$0xff]
  %v144 = vld [vmem:[%s3 + $0x58] sm:$0xff]
  %v145 = vld [vmem:[%s3 + $0x60] sm:$0xff]
  %v146 = vld [vmem:[%s3 + $0x68] sm:$0xff]
  %v147 = vld [vmem:[%s3 + $0x70] sm:$0xff]
  %v148 = vld [vmem:[%s3 + $0x78] sm:$0xff]
  %v149 = vld [vmem:[%s3 + $0x80] sm:$0xff]
  %v150 = vld [vmem:[%s3 + $0x88] sm:$0xff]
  %v151 = vld [vmem:[%s3 + $0x90] sm:$0xff]
  %v152 = vld [vmem:[%s3 + $0x98] sm:$0xff]
  %v153 = vld [vmem:[%s3 + $0xa0] sm:$0xff]
  %v154 = vld [vmem:[%s3 + $0xa8] sm:$0xff]
  %v155 = vld [vmem:[%s3 + $0xb0] sm:$0xff]
  %v156 = vld [vmem:[%s3 + $0xb8] sm:$0xff]
  %v157 = vld [vmem:[%s3 + $0xc0] sm:$0xff]
  %v158 = vld [vmem:[%s3 + $0xc8] sm:$0xff]
  %v159 = vld [vmem:[%s3 + $0xd0] sm:$0xff]
  %v160 = vld [vmem:[%s3 + $0xd8] sm:$0xff]
  %v161 = vld [vmem:[%s3 + $0xe0] sm:$0xff]
  %v162 = vld [vmem:[%s3 + $0xe8] sm:$0xff]
  %v163 = vld [vmem:[%s3 + $0xf0] sm:$0xff]
  %v164 = vld [vmem:[%s3 + $0xf8] sm:$0xff]
  %v165 = vld [vmem:[%s3 + $0x100] sm:$0xff]
  %v166 = vld [vmem:[%s3 + $0x108] sm:$0xff]
  %v167 = vld [vmem:[%s3 + $0x110] sm:$0xff]
  %v168 = vld [vmem:[%s3 + $0x118] sm:$0xff]
  %v169 = vld [vmem:[%s3 + $0x120] sm:$0xff]
  %v170 = vld [vmem:[%s3 + $0x128] sm:$0xff]
  %v171 = vld [vmem:[%s3 + $0x130] sm:$0xff]
  %v172 = vld [vmem:[%s3 + $0x138] sm:$0xff]
  %v173 = vld [vmem:[%s3 + $0x140] sm:$0xff]
  %v174 = vld [vmem:[%s3 + $0x148] sm:$0xff]
  %v175 = vld [vmem:[%s3 + $0x150] sm:$0xff]
  %v176 = vld [vmem:[%s3 + $0x158] sm:$0xff]
  %v177 = vld [vmem:[%s3 + $0x160] sm:$0xff]
  %v178 = vld [vmem:[%s3 + $0x168] sm:$0xff]
  %v179 = vld [vmem:[%s3 + $0x170] sm:$0xff]
  %v180 = vld [vmem:[%s3 + $0x178] sm:$0xff]
  %v181 = vld [vmem:[%s3 + $0x180] sm:$0xff]
  %v182 = vld [vmem:[%s3 + $0x188] sm:$0xff]
  %v183 = vld [vmem:[%s3 + $0x190] sm:$0xff]
  %v184 = vld [vmem:[%s3 + $0x198] sm:$0xff]
  %v185 = vld [vmem:[%s3 + $0x1a0] sm:$0xff]
  %v186 = vld [vmem:[%s3 + $0x1a8] sm:$0xff]
  %v187 = vld [vmem:[%s3 + $0x1b0] sm:$0xff]
  %v188 = vld [vmem:[%s3 + $0x1b8] sm:$0xff]
  %v189 = vld [vmem:[%s3 + $0x1c0] sm:$0xff]
  %v190 = vld [vmem:[%s3 + $0x1c8] sm:$0xff]
  %v191 = vld [vmem:[%s3 + $0x1d0] sm:$0xff]
  %v192 = vld [vmem:[%s3 + $0x1d8] sm:$0xff]
  %v193 = vld [vmem:[%s3 + $0x1e0] sm:$0xff]
  %v194 = vld [vmem:[%s3 + $0x1e8] sm:$0xff]
  %v195 = vld [vmem:[%s3 + $0x1f0] sm:$0xff]
  %v196 = vld [vmem:[%s3 + $0x1f8] sm:$0xff]
  %v197 = vld [vmem:[%s3 + $0x200] sm:$0xff]
  %v198 = vld [vmem:[%s3 + $0x208] sm:$0xff]
  %v199 = vld [vmem:[%s3 + $0x210] sm:$0xff]
  %v200 = vld [vmem:[%s3 + $0x218] sm:$0xff]
  %v201 = vld [vmem:[%s3 + $0x220] sm:$0xff]
  %v202 = vld [vmem:[%s3 + $0x228] sm:$0xff]
  %v203 = vld [vmem:[%s3 + $0x230] sm:$0xff]
  %v204 = vld [vmem:[%s3 + $0x238] sm:$0xff]
  %v205 = vld [vmem:[%s4] sm:$0x7]
  %v207 = vlaneseq
  %v208 = vshrl.u32 %v207, 7
  %v209 = vsub.s32 0, %v208
  %v210 = vrot.slane %v205, %v209
  %v211 = vlaneseq
  %v212 = vshrl.u32 %v211, 7
  %v213 = vsub.s32 1, %v212
  %v214 = vrot.slane %v205, %v213
  %v215 = vlaneseq
  %v216 = vshrl.u32 %v215, 7
  %v217 = vsub.s32 2, %v216
  %v218 = vrot.slane %v205, %v217
  %vm222 = vcmask 523264
  %v224 = vsel %vm222, %v132, 0
  %226 = vmatprep.subr.mxu0 %v179
  %227 = vmatpush1.msra.mxu0 %v178
  %228 = vmatprep.subr.mxu0 %v176
  %229 = vmatpush1.msra.mxu0 %v175
  %230 = vmatprep.subr.mxu0 %v173
  %231 = vmatpush1.msra.mxu0 %v172
  %232 = vmatprep.subr.mxu0 %v170
  %233 = vmatpush1.msra.mxu0 %v169
  %234 = vmatprep.subr.mxu0 %v167
  %235 = vmatpush1.msra.mxu0 %v166
  %236 = vmatprep.subr.mxu0 %v164
  %237 = vmatpush1.msra.mxu0 %v163
  %238 = vmatprep.subr.mxu0 %v161
  %239 = vmatpush1.msra.mxu0 %v160
  %240 = vmatprep.subr.mxu0 %v158
  %241 = vmatpush1.msra.mxu0 %v157
  %242 = vmatprep.subr.mxu0 %v155
  %243 = vmatpush1.msra.mxu0 %v154
  %244 = vmatprep.subr.mxu0 %v152
  %245 = vmatpush1.msra.mxu0 %v151
  %246 = vmatprep.subr.mxu0 %v149
  %247 = vmatpush1.msra.mxu0 %v148
  %248 = vmatprep.subr.mxu0 %v146
  %249 = vmatpush1.msra.mxu0 %v145
  %250 = vmatprep.subr.mxu0 %v143
  %251 = vmatpush1.msra.mxu0 %v142
  %252 = vmatprep.subr.mxu0 %v140
  %253 = vmatpush1.msra.mxu0 %v139
  %254 = vmatprep.subr.mxu0 %v137
  %255 = vmatpush1.msra.mxu0 %v136
  %256 = vmatprep.subr.mxu0 %v134
  %257 = vmatpush1.msra.mxu0 %v133
  %258 = vmatprep.subr.mxu0 0.0
  %259 = vmatpush2.msra.mxu0 0.0
  %260 = vmatprep.subr.mxu0 0.0
  %261 = vmatpush2.msra.mxu0 0.0
  %262 = vmatprep.subr.mxu0 0.0
  %263 = vmatpush2.msra.mxu0 0.0
  %264 = vmatprep.subr.mxu0 0.0
  %265 = vmatpush2.msra.mxu0 0.0
  %266 = vmatprep.subr.mxu0 0.0
  %267 = vmatpush2.msra.mxu0 0.0
  %268 = vmatprep.subr.mxu0 0.0
  %269 = vmatpush2.msra.mxu0 0.0
  %270 = vmatprep.subr.mxu0 0.0
  %271 = vmatpush2.msra.mxu0 0.0
  %272 = vmatprep.subr.mxu0 0.0
  %273 = vmatpush2.msra.mxu0 0.0
  %274 = vmatprep.subr.mxu0 %v203
  %275 = vmatpush2.msra.mxu0 %v202
  %276 = vmatprep.subr.mxu0 %v200
  %277 = vmatpush2.msra.mxu0 %v199
  %278 = vmatprep.subr.mxu0 %v197
  %279 = vmatpush2.msra.mxu0 %v196
  %280 = vmatprep.subr.mxu0 %v194
  %281 = vmatpush2.msra.mxu0 %v193
  %282 = vmatprep.subr.mxu0 %v191
  %283 = vmatpush2.msra.mxu0 %v190
  %284 = vmatprep.subr.mxu0 %v188
  %285 = vmatpush2.msra.mxu0 %v187
  %286 = vmatprep.subr.mxu0 %v185
  %287 = vmatpush2.msra.mxu0 %v184
  %288 = vmatprep.subr.mxu0 %v182
  %289 = vmatpush2.msra.mxu0 %v181
  %290 = vmatprep.mubr.f32.mxu0 %v224
  %291 = vmatmul.mubr.f32.gmra.mxu0 %v131
  %v292 = vpop.f32.mrf.mxu0
  %v293 = vadd.f32 %v210, %v292
  %v294 = vpop.f32.mrf.mxu0
  %v295 = vadd.f32 %v214, %v294
  %296 = vdwg.mxu0
  %297 = vmatprep.subr.mxu0 0.0
  %298 = vmatpush1.msra.mxu0 %v180
  %299 = vmatprep.subr.mxu0 0.0
  %300 = vmatpush1.msra.mxu0 %v177
  %301 = vmatprep.subr.mxu0 0.0
  %302 = vmatpush1.msra.mxu0 %v174
  %303 = vmatprep.subr.mxu0 0.0
  %304 = vmatpush1.msra.mxu0 %v171
  %305 = vmatprep.subr.mxu0 0.0
  %306 = vmatpush1.msra.mxu0 %v168
  %307 = vmatprep.subr.mxu0 0.0
  %308 = vmatpush1.msra.mxu0 %v165
  %309 = vmatprep.subr.mxu0 0.0
  %310 = vmatpush1.msra.mxu0 %v162
  %311 = vmatprep.subr.mxu0 0.0
  %312 = vmatpush1.msra.mxu0 %v159
  %313 = vmatprep.subr.mxu0 0.0
  %314 = vmatpush1.msra.mxu0 %v156
  %315 = vmatprep.subr.mxu0 0.0
  %316 = vmatpush1.msra.mxu0 %v153
  %317 = vmatprep.subr.mxu0 0.0
  %318 = vmatpush1.msra.mxu0 %v150
  %319 = vmatprep.subr.mxu0 0.0
  %320 = vmatpush1.msra.mxu0 %v147
  %321 = vmatprep.subr.mxu0 0.0
  %322 = vmatpush1.msra.mxu0 %v144
  %323 = vmatprep.subr.mxu0 0.0
  %324 = vmatpush1.msra.mxu0 %v141
  %325 = vmatprep.subr.mxu0 0.0
  %326 = vmatpush1.msra.mxu0 %v138
  %327 = vmatprep.subr.mxu0 0.0
  %328 = vmatpush1.msra.mxu0 %v135
  %329 = vmatprep.subr.mxu0 0.0
  %330 = vmatpush2.msra.mxu0 0.0
  %331 = vmatprep.subr.mxu0 0.0
  %332 = vmatpush2.msra.mxu0 0.0
  %333 = vmatprep.subr.mxu0 0.0
  %334 = vmatpush2.msra.mxu0 0.0
  %335 = vmatprep.subr.mxu0 0.0
  %336 = vmatpush2.msra.mxu0 0.0
  %337 = vmatprep.subr.mxu0 0.0
  %338 = vmatpush2.msra.mxu0 0.0
  %339 = vmatprep.subr.mxu0 0.0
  %340 = vmatpush2.msra.mxu0 0.0
  %341 = vmatprep.subr.mxu0 0.0
  %342 = vmatpush2.msra.mxu0 0.0
  %343 = vmatprep.subr.mxu0 0.0
  %344 = vmatpush2.msra.mxu0 0.0
  %345 = vmatprep.subr.mxu0 0.0
  %346 = vmatpush2.msra.mxu0 %v204
  %347 = vmatprep.subr.mxu0 0.0
  %348 = vmatpush2.msra.mxu0 %v201
  %349 = vmatprep.subr.mxu0 0.0
  %350 = vmatpush2.msra.mxu0 %v198
  %351 = vmatprep.subr.mxu0 0.0
  %352 = vmatpush2.msra.mxu0 %v195
  %353 = vmatprep.subr.mxu0 0.0
  %354 = vmatpush2.msra.mxu0 %v192
  %355 = vmatprep.subr.mxu0 0.0
  %356 = vmatpush2.msra.mxu0 %v189
  %357 = vmatprep.subr.mxu0 0.0
  %358 = vmatpush2.msra.mxu0 %v186
  %359 = vmatprep.subr.mxu0 0.0
  %360 = vmatpush2.msra.mxu0 %v183
  %361 = vmatprep.mubr.f32.mxu0 %v224
  %362 = vmatmul.mubr.f32.gmra.mxu0 %v131
  %v363 = vpop.f32.mrf.mxu0
  %v364 = vadd.f32 %v218, %v363
  %v365 = vpop.f32.mrf.mxu0
  %366 = vdwg.mxu0
  %v367 = vmax.f32 %v293, 0.0
  %v368 = vmax.f32 %v295, 0.0
  %v369 = vmax.f32 %v364, 0.0
  %v370 = vld [vmem:[%s5] sm:$0xff]
  %v371 = vld [vmem:[%s5 + $0x8] sm:$0xff]
  %v372 = vld [vmem:[%s5 + $0x10] sm:$0xff]
  %v373 = vld [vmem:[%s5 + $0x18] sm:$0xff]
  %v374 = vld [vmem:[%s5 + $0x20] sm:$0xff]
  %v375 = vld [vmem:[%s5 + $0x28] sm:$0xff]
  %v376 = vld [vmem:[%s5 + $0x30] sm:$0xff]
  %v377 = vld [vmem:[%s5 + $0x38] sm:$0xff]
  %v378 = vld [vmem:[%s5 + $0x40] sm:$0xff]
  %v379 = vld [vmem:[%s5 + $0x48] sm:$0xff]
  %v380 = vld [vmem:[%s5 + $0x50] sm:$0xff]
  %v381 = vld [vmem:[%s5 + $0x58] sm:$0xff]
  %v382 = vld [vmem:[%s5 + $0x60] sm:$0xff]
  %v383 = vld [vmem:[%s5 + $0x68] sm:$0xff]
  %v384 = vld [vmem:[%s5 + $0x70] sm:$0xff]
  %v385 = vld [vmem:[%s5 + $0x78] sm:$0xff]
  %v386 = vld [vmem:[%s5 + $0x80] sm:$0xff]
  %v387 = vld [vmem:[%s5 + $0x88] sm:$0xff]
  %v388 = vld [vmem:[%s5 + $0x90] sm:$0xff]
  %v389 = vld [vmem:[%s5 + $0x98] sm:$0xff]
  %v390 = vld [vmem:[%s5 + $0xa0] sm:$0xff]
  %v391 = vld [vmem:[%s5 + $0xa8] sm:$0xff]
  %v392 = vld [vmem:[%s5 + $0xb0] sm:$0xff]
  %v393 = vld [vmem:[%s5 + $0xb8] sm:$0xff]
  %v394 = vld [vmem:[%s5 + $0xc0] sm:$0xff]
  %v395 = vld [vmem:[%s5 + $0xc8] sm:$0xff]
  %v396 = vld [vmem:[%s5 + $0xd0] sm:$0xff]
  %v397 = vld [vmem:[%s5 + $0xd8] sm:$0xff]
  %v398 = vld [vmem:[%s5 + $0xe0] sm:$0xff]
  %v399 = vld [vmem:[%s5 + $0xe8] sm:$0xff]
  %v400 = vld [vmem:[%s5 + $0xf0] sm:$0xff]
  %v401 = vld [vmem:[%s5 + $0xf8] sm:$0xff]
  %v402 = vld [vmem:[%s5 + $0x100] sm:$0xff]
  %v403 = vld [vmem:[%s5 + $0x108] sm:$0xff]
  %v404 = vld [vmem:[%s5 + $0x110] sm:$0xff]
  %v405 = vld [vmem:[%s5 + $0x118] sm:$0xff]
  %v406 = vld [vmem:[%s5 + $0x120] sm:$0xff]
  %v407 = vld [vmem:[%s5 + $0x128] sm:$0xff]
  %v408 = vld [vmem:[%s5 + $0x130] sm:$0xff]
  %v409 = vld [vmem:[%s5 + $0x138] sm:$0xff]
  %v410 = vld [vmem:[%s5 + $0x140] sm:$0xff]
  %v411 = vld [vmem:[%s5 + $0x148] sm:$0xff]
  %v412 = vld [vmem:[%s5 + $0x150] sm:$0xff]
  %v413 = vld [vmem:[%s5 + $0x158] sm:$0xff]
  %v414 = vld [vmem:[%s5 + $0x160] sm:$0xff]
  %v415 = vld [vmem:[%s5 + $0x168] sm:$0xff]
  %v416 = vld [vmem:[%s5 + $0x170] sm:$0xff]
  %v417 = vld [vmem:[%s5 + $0x178] sm:$0xff]
  %v418 = vld [vmem:[%s6] sm:$0x1]
  %v420 = vlaneseq
  %v421 = vshrl.u32 %v420, 7
  %v422 = vsub.s32 0, %v421
  %v423 = vrot.slane %v418, %v422
  %425 = vmatprep.subr.mxu0 0.0
  %426 = vmatpush1.msra.mxu0 %v385
  %427 = vmatprep.subr.mxu0 0.0
  %428 = vmatpush1.msra.mxu0 %v384
  %429 = vmatprep.subr.mxu0 0.0
  %430 = vmatpush1.msra.mxu0 %v383
  %431 = vmatprep.subr.mxu0 0.0
  %432 = vmatpush1.msra.mxu0 %v382
  %433 = vmatprep.subr.mxu0 0.0
  %434 = vmatpush1.msra.mxu0 %v381
  %435 = vmatprep.subr.mxu0 0.0
  %436 = vmatpush1.msra.mxu0 %v380
  %437 = vmatprep.subr.mxu0 0.0
  %438 = vmatpush1.msra.mxu0 %v379
  %439 = vmatprep.subr.mxu0 0.0
  %440 = vmatpush1.msra.mxu0 %v378
  %441 = vmatprep.subr.mxu0 0.0
  %442 = vmatpush1.msra.mxu0 %v377
  %443 = vmatprep.subr.mxu0 0.0
  %444 = vmatpush1.msra.mxu0 %v376
  %445 = vmatprep.subr.mxu0 0.0
  %446 = vmatpush1.msra.mxu0 %v375
  %447 = vmatprep.subr.mxu0 0.0
  %448 = vmatpush1.msra.mxu0 %v374
  %449 = vmatprep.subr.mxu0 0.0
  %450 = vmatpush1.msra.mxu0 %v373
  %451 = vmatprep.subr.mxu0 0.0
  %452 = vmatpush1.msra.mxu0 %v372
  %453 = vmatprep.subr.mxu0 0.0
  %454 = vmatpush1.msra.mxu0 %v371
  %455 = vmatprep.subr.mxu0 0.0
  %456 = vmatpush1.msra.mxu0 %v370
  %457 = vmatprep.subr.mxu0 0.0
  %458 = vmatpush2.msra.mxu0 %v401
  %459 = vmatprep.subr.mxu0 0.0
  %460 = vmatpush2.msra.mxu0 %v400
  %461 = vmatprep.subr.mxu0 0.0
  %462 = vmatpush2.msra.mxu0 %v399
  %463 = vmatprep.subr.mxu0 0.0
  %464 = vmatpush2.msra.mxu0 %v398
  %465 = vmatprep.subr.mxu0 0.0
  %466 = vmatpush2.msra.mxu0 %v397
  %467 = vmatprep.subr.mxu0 0.0
  %468 = vmatpush2.msra.mxu0 %v396
  %469 = vmatprep.subr.mxu0 0.0
  %470 = vmatpush2.msra.mxu0 %v395
  %471 = vmatprep.subr.mxu0 0.0
  %472 = vmatpush2.msra.mxu0 %v394
  %473 = vmatprep.subr.mxu0 0.0
  %474 = vmatpush2.msra.mxu0 %v393
  %475 = vmatprep.subr.mxu0 0.0
  %476 = vmatpush2.msra.mxu0 %v392
  %477 = vmatprep.subr.mxu0 0.0
  %478 = vmatpush2.msra.mxu0 %v391
  %479 = vmatprep.subr.mxu0 0.0
  %480 = vmatpush2.msra.mxu0 %v390
  %481 = vmatprep.subr.mxu0 0.0
  %482 = vmatpush2.msra.mxu0 %v389
  %483 = vmatprep.subr.mxu0 0.0
  %484 = vmatpush2.msra.mxu0 %v388
  %485 = vmatprep.subr.mxu0 0.0
  %486 = vmatpush2.msra.mxu0 %v387
  %487 = vmatprep.subr.mxu0 0.0
  %488 = vmatpush2.msra.mxu0 %v386
  %489 = vmatprep.mubr.f32.mxu0 %v368
  %490 = vmatmul.mubr.f32.gmra.mxu0 %v367
  %v491 = vpop.f32.mrf.mxu0
  %v492 = vadd.f32 %v423, %v491
  %v493 = vpop.f32.mrf.mxu0
  %494 = vdwg.mxu0
  %495 = vmatprep.subr.mxu0 0.0
  %496 = vmatpush1.msra.mxu0 %v417
  %497 = vmatprep.subr.mxu0 0.0
  %498 = vmatpush1.msra.mxu0 %v416
  %499 = vmatprep.subr.mxu0 0.0
  %500 = vmatpush1.msra.mxu0 %v415
  %501 = vmatprep.subr.mxu0 0.0
  %502 = vmatpush1.msra.mxu0 %v414
  %503 = vmatprep.subr.mxu0 0.0
  %504 = vmatpush1.msra.mxu0 %v413
  %505 = vmatprep.subr.mxu0 0.0
  %506 = vmatpush1.msra.mxu0 %v412
  %507 = vmatprep.subr.mxu0 0.0
  %508 = vmatpush1.msra.mxu0 %v411
  %509 = vmatprep.subr.mxu0 0.0
  %510 = vmatpush1.msra.mxu0 %v410
  %511 = vmatprep.subr.mxu0 0.0
  %512 = vmatpush1.msra.mxu0 %v409
  %513 = vmatprep.subr.mxu0 0.0
  %514 = vmatpush1.msra.mxu0 %v408
  %515 = vmatprep.subr.mxu0 0.0
  %516 = vmatpush1.msra.mxu0 %v407
  %517 = vmatprep.subr.mxu0 0.0
  %518 = vmatpush1.msra.mxu0 %v406
  %519 = vmatprep.subr.mxu0 0.0
  %520 = vmatpush1.msra.mxu0 %v405
  %521 = vmatprep.subr.mxu0 0.0
  %522 = vmatpush1.msra.mxu0 %v404
  %523 = vmatprep.subr.mxu0 0.0
  %524 = vmatpush1.msra.mxu0 %v403
  %525 = vmatprep.subr.mxu0 0.0
  %526 = vmatpush1.msra.mxu0 %v402
  %527 = vmatprep.subr.mxu0 0.0
  %528 = vmatpush2.msra.mxu0 0.0
  %529 = vmatprep.subr.mxu0 0.0
  %530 = vmatpush2.msra.mxu0 0.0
  %531 = vmatprep.subr.mxu0 0.0
  %532 = vmatpush2.msra.mxu0 0.0
  %533 = vmatprep.subr.mxu0 0.0
  %534 = vmatpush2.msra.mxu0 0.0
  %535 = vmatprep.subr.mxu0 0.0
  %536 = vmatpush2.msra.mxu0 0.0
  %537 = vmatprep.subr.mxu0 0.0
  %538 = vmatpush2.msra.mxu0 0.0
  %539 = vmatprep.subr.mxu0 0.0
  %540 = vmatpush2.msra.mxu0 0.0
  %541 = vmatprep.subr.mxu0 0.0
  %542 = vmatpush2.msra.mxu0 0.0
  %543 = vmatprep.subr.mxu0 0.0
  %544 = vmatpush2.msra.mxu0 0.0
  %545 = vmatprep.subr.mxu0 0.0
  %546 = vmatpush2.msra.mxu0 0.0
  %547 = vmatprep.subr.mxu0 0.0
  %548 = vmatpush2.msra.mxu0 0.0
  %549 = vmatprep.subr.mxu0 0.0
  %550 = vmatpush2.msra.mxu0 0.0
  %551 = vmatprep.subr.mxu0 0.0
  %552 = vmatpush2.msra.mxu0 0.0
  %553 = vmatprep.subr.mxu0 0.0
  %554 = vmatpush2.msra.mxu0 0.0
  %555 = vmatprep.subr.mxu0 0.0
  %556 = vmatpush2.msra.mxu0 0.0
  %557 = vmatprep.subr.mxu0 0.0
  %558 = vmatpush2.msra.mxu0 0.0
  %559 = vmatprep.mubr.f32.mxu0 0.0
  %560 = vmatmul.mubr.f32.gmra.mxu0 %v369
  %v561 = vpop.f32.mrf.mxu0
  %v562 = vadd.f32 %v492, %v561
  %v563 = vpop.f32.mrf.mxu0
  %564 = vdwg.mxu0
  %v565 = vmax.f32 %v562, 0.0
  %v566 = vld [vmem:[%s7] sm:$0xff]
  %v567 = vld [vmem:[%s7 + $0x8] sm:$0xff]
  %v568 = vld [vmem:[%s7 + $0x10] sm:$0xff]
  %v569 = vld [vmem:[%s7 + $0x18] sm:$0xff]
  %v570 = vld [vmem:[%s7 + $0x20] sm:$0xff]
  %v571 = vld [vmem:[%s7 + $0x28] sm:$0xff]
  %v572 = vld [vmem:[%s7 + $0x30] sm:$0xff]
  %v573 = vld [vmem:[%s7 + $0x38] sm:$0xff]
  %v574 = vld [vmem:[%s7 + $0x40] sm:$0xff]
  %v575 = vld [vmem:[%s7 + $0x48] sm:$0xff]
  %v576 = vld [vmem:[%s7 + $0x50] sm:$0xff]
  %v577 = vld [vmem:[%s7 + $0x58] sm:$0xff]
  %v578 = vld [vmem:[%s7 + $0x60] sm:$0xff]
  %v579 = vld [vmem:[%s7 + $0x68] sm:$0xff]
  %v580 = vld [vmem:[%s7 + $0x70] sm:$0xff]
  %v581 = vld [vmem:[%s7 + $0x78] sm:$0xff]
  %v582 = vld [vmem:[%s8] sm:$0x1]
  %v584 = vlaneseq
  %v585 = vshrl.u32 %v584, 7
  %v586 = vsub.s32 0, %v585
  %v587 = vrot.slane %v582, %v586
  %589 = vmatprep.subr.mxu0 0.0
  %590 = vmatpush1.msra.mxu0 %v581
  %591 = vmatprep.subr.mxu0 0.0
  %592 = vmatpush1.msra.mxu0 %v580
  %593 = vmatprep.subr.mxu0 0.0
  %594 = vmatpush1.msra.mxu0 %v579
  %595 = vmatprep.subr.mxu0 0.0
  %596 = vmatpush1.msra.mxu0 %v578
  %597 = vmatprep.subr.mxu0 0.0
  %598 = vmatpush1.msra.mxu0 %v577
  %599 = vmatprep.subr.mxu0 0.0
  %600 = vmatpush1.msra.mxu0 %v576
  %601 = vmatprep.subr.mxu0 0.0
  %602 = vmatpush1.msra.mxu0 %v575
  %603 = vmatprep.subr.mxu0 0.0
  %604 = vmatpush1.msra.mxu0 %v574
  %605 = vmatprep.subr.mxu0 0.0
  %606 = vmatpush1.msra.mxu0 %v573
  %607 = vmatprep.subr.mxu0 0.0
  %608 = vmatpush1.msra.mxu0 %v572
  %609 = vmatprep.subr.mxu0 0.0
  %610 = vmatpush1.msra.mxu0 %v571
  %611 = vmatprep.subr.mxu0 0.0
  %612 = vmatpush1.msra.mxu0 %v570
  %613 = vmatprep.subr.mxu0 0.0
  %614 = vmatpush1.msra.mxu0 %v569
  %615 = vmatprep.subr.mxu0 0.0
  %616 = vmatpush1.msra.mxu0 %v568
  %617 = vmatprep.subr.mxu0 0.0
  %618 = vmatpush1.msra.mxu0 %v567
  %619 = vmatprep.subr.mxu0 0.0
  %620 = vmatpush1.msra.mxu0 %v566
  %621 = vmatprep.subr.mxu0 0.0
  %622 = vmatpush2.msra.mxu0 0.0
  %623 = vmatprep.subr.mxu0 0.0
  %624 = vmatpush2.msra.mxu0 0.0
  %625 = vmatprep.subr.mxu0 0.0
  %626 = vmatpush2.msra.mxu0 0.0
  %627 = vmatprep.subr.mxu0 0.0
  %628 = vmatpush2.msra.mxu0 0.0
  %629 = vmatprep.subr.mxu0 0.0
  %630 = vmatpush2.msra.mxu0 0.0
  %631 = vmatprep.subr.mxu0 0.0
  %632 = vmatpush2.msra.mxu0 0.0
  %633 = vmatprep.subr.mxu0 0.0
  %634 = vmatpush2.msra.mxu0 0.0
  %635 = vmatprep.subr.mxu0 0.0
  %636 = vmatpush2.msra.mxu0 0.0
  %637 = vmatprep.subr.mxu0 0.0
  %638 = vmatpush2.msra.mxu0 0.0
  %639 = vmatprep.subr.mxu0 0.0
  %640 = vmatpush2.msra.mxu0 0.0
  %641 = vmatprep.subr.mxu0 0.0
  %642 = vmatpush2.msra.mxu0 0.0
  %643 = vmatprep.subr.mxu0 0.0
  %644 = vmatpush2.msra.mxu0 0.0
  %645 = vmatprep.subr.mxu0 0.0
  %646 = vmatpush2.msra.mxu0 0.0
  %647 = vmatprep.subr.mxu0 0.0
  %648 = vmatpush2.msra.mxu0 0.0
  %649 = vmatprep.subr.mxu0 0.0
  %650 = vmatpush2.msra.mxu0 0.0
  %651 = vmatprep.subr.mxu0 0.0
  %652 = vmatpush2.msra.mxu0 0.0
  %653 = vmatprep.mubr.f32.mxu0 0.0
  %654 = vmatmul.mubr.f32.gmra.mxu0 %v565
  %v655 = vpop.f32.mrf.mxu0
  %v656 = vadd.f32 %v587, %v655
  %v657 = vpop.f32.mrf.mxu0
  %658 = vdwg.mxu0
  %659 = vst [vmem:[%s9] sm:$0xff] %v656
  // Predicated region
  $region38: #{fishcnn_forward.1} parent=0 // pred_check
    _
  $region39: #{fishcnn_forward.1} parent=0 // pred_check_branch
    %661 = sbr.rel (0) target = $region41
  $region40: #{fishcnn_forward.1} parent=0 // pred_region
    _
  $region41: #{fishcnn_forward.1} parent=0 // pred_fallthru
    _
  // Predicated region
  $region42: #{fishcnn_forward.1} parent=0 // pred_check
    _
  $region43: #{fishcnn_forward.1} parent=0 // pred_check_branch
    %663 = sbr.rel (0) target = $region45
  $region44: #{fishcnn_forward.1} parent=0 // pred_region
    _
  $region45: #{fishcnn_forward.1} parent=0 // pred_fallthru
    _

</llo_original>
